<compile_context>
chip_gen: v6e
topology: v6e:2x2x1
jax: 0.10.0
libtpu: 0.0.40
codegen_flags: <defaults>
</compile_context>

<pallas_src>
import functools

import jax
import jax.numpy as jnp
import numpy as np
from jax.experimental import pallas as pl
from jax.experimental.pallas import tpu as pltpu


def _round_up(x: int, m: int) -> int:
    return (x + m - 1) // m * m


def _supcon_kernel(alab_ref, clab_ref, anchor_ref, feats_ref, loss_ref, *,
                   temperature: float):
    """Per-anchor SupCon losses for one tile of anchor rows.

    alab_ref   : [TM, 1]   int32 anchor labels   (padded rows  = -2)
    clab_ref   : [1,  Np]  int32 contrast labels (padded cols  = -1)
    anchor_ref : [TM, Dp]  bf16 anchor features
    feats_ref  : [Np, Dp]  bf16 contrast features (resident across the grid)
    loss_ref   : [TM, 1]   f32 per-anchor loss (0 for padded / positive-free rows)
    """
    tm = anchor_ref.shape[0]
    n_pad = feats_ref.shape[0]
    inv_temp = 1.0 / temperature

    # Fold 1/temperature into the small [TM, Dp] anchor tile (not the [TM, Np]
    # logits); NT contraction feeds the MXU without an XLU transpose.
    a = anchor_ref[...] * jnp.asarray(inv_temp, dtype=anchor_ref.dtype)
    sims = jax.lax.dot_general(
        a, feats_ref[...],
        dimension_numbers=(((1,), (1,)), ((), ())),
        preferred_element_type=jnp.float32)                      # [TM, Np] f32

    # Rebuild masks in-registers from labels + iota (no O(N^2) HBM traffic).
    alab = alab_ref[...]                                         # [TM, 1] int32
    clab = clab_ref[...]                                         # [1, Np] int32
    col_ids = jax.lax.broadcasted_iota(jnp.int32, (tm, n_pad), 1)
    row_ids = (jax.lax.broadcasted_iota(jnp.int32, (tm, n_pad), 0)
               + pl.program_id(0) * tm)
    not_self = col_ids != row_ids
    denom_mask = jnp.logical_and(not_self, clab >= 0)            # valid, non-self
    pos_mask = jnp.logical_and(alab == clab, denom_mask)         # positive pairs

    # Numerically-stable masked log-softmax: the max is taken over exactly the
    # columns that enter the denominator, so the denominator never underflows.
    row_max = jnp.max(jnp.where(denom_mask, sims, -jnp.inf),
                      axis=1, keepdims=True)
    scaled = sims - row_max
    exp_s = jnp.where(denom_mask, jnp.exp(scaled), 0.0)
    log_denom = jnp.log(jnp.sum(exp_s, axis=1, keepdims=True))
    log_prob = scaled - log_denom

    pos_f = pos_mask.astype(jnp.float32)
    num = jnp.sum(pos_f * log_prob, axis=1, keepdims=True)       # [TM, 1]
    den = jnp.sum(pos_f, axis=1, keepdims=True)                  # [TM, 1]
    inv_den = pl.reciprocal(jnp.where(den > 0.0, den, 1.0), approx=True)
    mean_view = jnp.where(den > 0.0, num * inv_den, 0.0)         # guard 0/0

    loss_ref[...] = (-temperature) * mean_view


def supcon_loss(features, labels=None, mask=None, temperature: float = 0.1,
                contrast_mode: str = 'all', normalize_features: bool = False,
                anchor_tile: int = 256):
    """JAX/Pallas equivalent of SupConLoss.forward."""
    if features.ndim < 3:
        raise ValueError('`features` needs to be at least 3 dimensional.')
    if contrast_mode not in ('all', 'one'):
        raise ValueError(f'Invalid contrast mode {contrast_mode}')

    batch_size, n_views = features.shape[0], features.shape[1]
    features = features.reshape(batch_size, n_views, -1).astype(jnp.float32)
    feat_dim = features.shape[-1]

    if labels is None and mask is not None:
        # TODO(synk): user-supplied dense `mask` is not reducible to labels; this
        # path falls back to the pure-JAX mirror (a second Pallas kernel taking
        # an int8 tiled mask would cover it).
        return _supcon_loss_ref(features, labels=None, mask=mask,
                                temperature=temperature,
                                contrast_mode=contrast_mode,
                                normalize_features=normalize_features)

    if labels is not None:
        labels = labels.reshape(-1)
        if labels.shape[0] != batch_size:
            raise ValueError('Num of labels does not match num of features')
        labels_i32 = labels.astype(jnp.int32)
        labels_i32 = labels_i32 - jnp.min(labels_i32)   # pad sentinels are < 0
    else:
        # SimCLR identity mask == every sample is its own class.
        labels_i32 = jnp.arange(batch_size, dtype=jnp.int32)

    if normalize_features:
        features = features / jnp.linalg.norm(features, axis=2, keepdims=True)

    # view-0 rows first, then view-1, ... (matches torch.cat(torch.unbind(...)))
    flattened = jnp.concatenate([features[:, v] for v in range(n_views)], axis=0)
    if contrast_mode == 'one':
        anchor, num_anchors = features[:, 0], 1
    else:
        anchor, num_anchors = flattened, n_views

    n_anchor = num_anchors * batch_size
    n_total = n_views * batch_size

    # ---- padded, lane-aligned shapes -------------------------------------
    tm = _round_up(min(int(anchor_tile), _round_up(n_anchor, 8)), 8)
    na_pad = _round_up(n_anchor, tm)
    n_pad = _round_up(n_total, 128)
    d_pad = _round_up(feat_dim, 128)
    num_tiles = na_pad // tm

    # bf16 MXU inputs; f32 accumulation / softmax math happens in the kernel.
    anchor_bf = jnp.pad(anchor.astype(jnp.bfloat16),
                        ((0, na_pad - n_anchor), (0, d_pad - feat_dim)))
    feats_bf = jnp.pad(flattened.astype(jnp.bfloat16),
                       ((0, n_pad - n_total), (0, d_pad - feat_dim)))

    a_labels = jnp.pad(jnp.tile(labels_i32, num_anchors),
                       (0, na_pad - n_anchor),
                       constant_values=-2).reshape(na_pad, 1)
    c_labels = jnp.pad(jnp.tile(labels_i32, n_views),
                       (0, n_pad - n_total),
                       constant_values=-1).reshape(1, n_pad)

    # VMEM budget: resident contrast block + double-buffered anchor tile +
    # f32 [TM, Np] intermediates; stay under v7x's 64 MiB with headroom.
    est = (2 * n_pad * d_pad * 2 + 2 * tm * d_pad * 2
           + 2 * (tm + n_pad) * 4 + 2 * tm * 4
           + 6 * tm * n_pad * 4)
    vmem_limit = int(min(max(est, 32 * 1024 * 1024), 48 * 1024 * 1024))

    # TODO(synk): for contrast dims too large for a resident [Np, Dp] block, add
    # a second grid axis over Np with an online (flash-style) log-sum-exp.
    kernel = functools.partial(_supcon_kernel, temperature=float(temperature))
    per_anchor = pl.pallas_call(
        kernel,
        out_shape=jax.ShapeDtypeStruct((na_pad, 1), jnp.float32),
        grid=(num_tiles,),
        in_specs=[
            pl.BlockSpec((tm, 1), lambda i: (i, 0)),          # anchor labels
            pl.BlockSpec((1, n_pad), lambda i: (0, 0)),       # contrast labels
            pl.BlockSpec((tm, d_pad), lambda i: (i, 0)),      # anchor tile
            pl.BlockSpec((n_pad, d_pad), lambda i: (0, 0)),   # contrast (resident)
        ],
        out_specs=pl.BlockSpec((tm, 1), lambda i: (i, 0)),
        compiler_params=pltpu.CompilerParams(
            dimension_semantics=("parallel",),
            vmem_limit_bytes=vmem_limit),
    )(a_labels, c_labels, anchor_bf, feats_bf)

    # Padded / positive-free rows contribute exactly 0 to the sum.
    return jnp.sum(per_anchor) / jnp.float32(n_anchor)


def _supcon_loss_ref(features, labels=None, mask=None, temperature=0.1,
                     contrast_mode='all', normalize_features=False,
                     bf16_matmul=False):
    """Pure-JAX mirror of the PyTorch forward (validation + mask fallback)."""
    batch_size, n_views = features.shape[0], features.shape[1]
    features = features.reshape(batch_size, n_views, -1).astype(jnp.float32)
    if labels is not None:
        labels = labels.reshape(-1, 1)
        base = (labels == labels.T).astype(jnp.float32)
    elif mask is None:
        base = jnp.eye(batch_size, dtype=jnp.float32)
    else:
        base = mask.astype(jnp.float32)
    if normalize_features:
        features = features / jnp.linalg.norm(features, axis=2, keepdims=True)
    flat = jnp.concatenate([features[:, v] for v in range(n_views)], axis=0)
    if contrast_mode == 'one':
        anchor, na = features[:, 0], 1
    else:
        anchor, na = flat, n_views
    if bf16_matmul:   # mirrors the kernel's bf16 MXU inputs / folded 1/T
        a_s = (anchor.astype(jnp.bfloat16)
               * jnp.asarray(1.0 / temperature, jnp.bfloat16)).astype(jnp.float32)
        sims = a_s @ flat.astype(jnp.bfloat16).astype(jnp.float32).T
    else:
        sims = (anchor @ flat.T) / temperature
    sims = sims - jnp.max(sims, axis=1, keepdims=True)
    m = jnp.tile(base, (na, n_views))
    n_anchor = na * batch_size
    noself = (jnp.arange(flat.shape[0])[None, :]
              != jnp.arange(n_anchor)[:, None]).astype(jnp.float32)
    m = m * noself
    exp_s = jnp.exp(sims) * noself
    log_prob = sims - jnp.log(exp_s.sum(1, keepdims=True))
    mean_view = (m * log_prob).sum(1) / m.sum(1)
    return jnp.mean(-temperature * mean_view)


if __name__ == "__main__":
    key = jax.random.PRNGKey(0)
    k_feat, k_lab = jax.random.split(key)

    batch_size, n_views, feat_dim = 8, 2, 32
    features = jax.random.normal(k_feat, (batch_size, n_views, feat_dim),
                                 dtype=jnp.float32)
    labels = jax.random.randint(k_lab, (batch_size,), 0, 4)

    temperature = 0.1
    # With *unnormalized* random features and temperature=0.1 the reference math
    # itself over/underflows exp() into NaN (that was the previous failure), so
    # the demo exercises the module's normalize_features option — the standard
    # setting for contrastive losses.
    normalize_features = True

    configs = [
        dict(labels=labels, contrast_mode='all'),   # supervised, all-view anchors
        dict(labels=None, contrast_mode='one'),     # SimCLR identity-mask path
    ]
    for cfg in configs:
        loss = supcon_loss(features, labels=cfg['labels'],
                           temperature=temperature,
                           contrast_mode=cfg['contrast_mode'],
                           normalize_features=normalize_features)
        loss = jax.block_until_ready(loss)

        ref_bf16 = _supcon_loss_ref(features, labels=cfg['labels'],
                                    temperature=temperature,
                                    contrast_mode=cfg['contrast_mode'],
                                    normalize_features=normalize_features,
                                    bf16_matmul=True)
        ref_f32 = _supcon_loss_ref(features, labels=cfg['labels'],
                                   temperature=temperature,
                                   contrast_mode=cfg['contrast_mode'],
                                   normalize_features=normalize_features,
                                   bf16_matmul=False)

        assert np.allclose(np.asarray(loss), np.asarray(ref_bf16),
                           rtol=5e-3, atol=5e-3), (cfg['contrast_mode'], loss, ref_bf16)
        assert np.allclose(np.asarray(loss), np.asarray(ref_f32),
                           rtol=5e-2, atol=5e-2), (cfg['contrast_mode'], loss, ref_f32)

    print("KERNEL_OK")
</pallas_src>

<mosaic_0001>
module attributes {stable_mosaic.version = 11 : i64} {
  func.func @_supcon_kernel(%arg0: i32, %arg1: memref<16x1xi32, #tpu.memory_space<vmem>>, %arg2: memref<1x128xi32, #tpu.memory_space<vmem>>, %arg3: memref<16x128xbf16, #tpu.memory_space<vmem>>, %arg4: memref<128x128xbf16, #tpu.memory_space<vmem>>, %arg5: memref<16x1xf32, #tpu.memory_space<vmem>>) attributes {dimension_semantics = [#tpu.dimension_semantics<parallel>], iteration_bounds = array<i64: 1>, scalar_prefetch = 0 : i64, scratch_operands = 0 : i64, tpu.core_type = #tpu.core_type<tc>, window_params = [{transform_indices = @transform_0, window_bounds = array<i64: 16, 1>}, {pipeline_mode = #tpu.pipeline_mode<synchronous>, transform_indices = @transform_1, window_bounds = array<i64: 1, 128>}, {transform_indices = @transform_2, window_bounds = array<i64: 16, 128>}, {pipeline_mode = #tpu.pipeline_mode<synchronous>, transform_indices = @transform_3, window_bounds = array<i64: 128, 128>}, {transform_indices = @transform_4, window_bounds = array<i64: 16, 1>}]} {
    %c0 = arith.constant 0 : index
    %c0_0 = arith.constant 0 : index
    %0 = vector.load %arg3[%c0, %c0_0] : memref<16x128xbf16, #tpu.memory_space<vmem>>, vector<16x128xbf16>
    %cst = arith.constant 1.000000e+01 : bf16
    %1 = vector.broadcast %cst : bf16 to vector<16x128xbf16>
    %2 = arith.mulf %0, %1 : vector<16x128xbf16>
    %c0_1 = arith.constant 0 : index
    %c0_2 = arith.constant 0 : index
    %3 = vector.load %arg4[%c0_1, %c0_2] : memref<128x128xbf16, #tpu.memory_space<vmem>>, vector<128x128xbf16>
    %cst_3 = arith.constant dense<0.000000e+00> : vector<16x128xf32>
    %4 = tpu.matmul %2, %3, %cst_3 {dimension_numbers = #tpu.dot_dimension_numbers<[1], [1], [0], [0], [0, 0, 1, 0], [], []>} : vector<16x128xbf16>, vector<128x128xbf16>, vector<16x128xf32> -> vector<16x128xf32>
    %c0_4 = arith.constant 0 : index
    %c0_5 = arith.constant 0 : index
    %5 = vector.load %arg1[%c0_4, %c0_5] : memref<16x1xi32, #tpu.memory_space<vmem>>, vector<16x1xi32>
    %c0_6 = arith.constant 0 : index
    %c0_7 = arith.constant 0 : index
    %6 = vector.load %arg2[%c0_6, %c0_7] : memref<1x128xi32, #tpu.memory_space<vmem>>, vector<1x128xi32>
    %7 = tpu.iota {dimensions = array<i32: 1>} : vector<16x128xi32>
    %8 = tpu.iota {dimensions = array<i32: 0>} : vector<16x128xi32>
    %c16_i32 = arith.constant 16 : i32
    %9 = arith.muli %arg0, %c16_i32 : i32
    %10 = vector.broadcast %9 : i32 to vector<16x128xi32>
    %11 = arith.addi %8, %10 : vector<16x128xi32>
    %12 = arith.cmpi ne, %7, %11 : vector<16x128xi32>
    %c0_i32 = arith.constant 0 : i32
    %13 = vector.broadcast %c0_i32 : i32 to vector<1x128xi32>
    %14 = arith.cmpi sge, %6, %13 : vector<1x128xi32>
    %15 = vector.broadcast %14 : vector<1x128xi1> to vector<16x128xi1>
    %16 = arith.andi %12, %15 : vector<16x128xi1>
    %17 = vector.broadcast %5 : vector<16x1xi32> to vector<16x128xi32>
    %18 = vector.broadcast %6 : vector<1x128xi32> to vector<16x128xi32>
    %19 = arith.cmpi eq, %17, %18 : vector<16x128xi32>
    %20 = arith.andi %19, %16 : vector<16x128xi1>
    %cst_8 = arith.constant 0xFF800000 : f32
    %21 = vector.broadcast %cst_8 : f32 to vector<16x128xf32>
    %22 = arith.select %16, %4, %21 : vector<16x128xi1>, vector<16x128xf32>
    %cst_9 = arith.constant dense<0xFF800000> : vector<16xf32>
    %23 = vector.multi_reduction <maximumf>, %22, %cst_9 [1] : vector<16x128xf32> to vector<16xf32>
    %24 = vector.shape_cast %23 : vector<16xf32> to vector<16x1xf32>
    %25 = vector.broadcast %24 : vector<16x1xf32> to vector<16x128xf32>
    %26 = arith.subf %4, %25 : vector<16x128xf32>
    %27 = math.exp %26 : vector<16x128xf32>
    %cst_10 = arith.constant 0.000000e+00 : f32
    %28 = vector.broadcast %cst_10 : f32 to vector<16x128xf32>
    %29 = arith.select %16, %27, %28 : vector<16x128xi1>, vector<16x128xf32>
    %cst_11 = arith.constant dense<0.000000e+00> : vector<16xf32>
    %30 = vector.multi_reduction <add>, %29, %cst_11 [1] : vector<16x128xf32> to vector<16xf32>
    %31 = vector.shape_cast %30 : vector<16xf32> to vector<16x1xf32>
    %32 = math.log %31 : vector<16x1xf32>
    %33 = vector.broadcast %32 : vector<16x1xf32> to vector<16x128xf32>
    %34 = arith.subf %26, %33 : vector<16x128xf32>
    %35 = arith.extui %20 : vector<16x128xi1> to vector<16x128xi32>
    %36 = arith.sitofp %35 : vector<16x128xi32> to vector<16x128xf32>
    %37 = arith.mulf %36, %34 : vector<16x128xf32>
    %cst_12 = arith.constant dense<0.000000e+00> : vector<16xf32>
    %38 = vector.multi_reduction <add>, %37, %cst_12 [1] : vector<16x128xf32> to vector<16xf32>
    %39 = vector.shape_cast %38 : vector<16xf32> to vector<16x1xf32>
    %cst_13 = arith.constant dense<0.000000e+00> : vector<16xf32>
    %40 = vector.multi_reduction <add>, %36, %cst_13 [1] : vector<16x128xf32> to vector<16xf32>
    %41 = vector.shape_cast %40 : vector<16xf32> to vector<16x1xf32>
    %cst_14 = arith.constant 0.000000e+00 : f32
    %42 = vector.broadcast %cst_14 : f32 to vector<16x1xf32>
    %43 = arith.cmpf ogt, %41, %42 : vector<16x1xf32>
    %cst_15 = arith.constant 1.000000e+00 : f32
    %44 = vector.broadcast %cst_15 : f32 to vector<16x1xf32>
    %45 = arith.select %43, %41, %44 : vector<16x1xi1>, vector<16x1xf32>
    %46 = tpu.reciprocal %45 {approx = true} : vector<16x1xf32> -> vector<16x1xf32>
    %cst_16 = arith.constant 0.000000e+00 : f32
    %47 = vector.broadcast %cst_16 : f32 to vector<16x1xf32>
    %48 = arith.cmpf ogt, %41, %47 : vector<16x1xf32>
    %49 = arith.mulf %39, %46 : vector<16x1xf32>
    %cst_17 = arith.constant 0.000000e+00 : f32
    %50 = vector.broadcast %cst_17 : f32 to vector<16x1xf32>
    %51 = arith.select %48, %49, %50 : vector<16x1xi1>, vector<16x1xf32>
    %cst_18 = arith.constant -1.000000e-01 : f32
    %52 = vector.broadcast %cst_18 : f32 to vector<16x1xf32>
    %53 = arith.mulf %52, %51 : vector<16x1xf32>
    %c0_19 = arith.constant 0 : index
    %c0_20 = arith.constant 0 : index
    %54 = vector.load %arg5[%c0_19, %c0_20] : memref<16x1xf32, #tpu.memory_space<vmem>>, vector<16x1xf32>
    tpu.vector_store %arg5[%c0_19, %c0_20], %53 {strides = array<i32>} : memref<16x1xf32, #tpu.memory_space<vmem>>, vector<16x1xf32>,
    return
  }
  func.func @transform_0(%arg0: i32) -> (i32, i32) {
    %c0_i32 = arith.constant 0 : i32
    %c0_i32_0 = arith.constant 0 : i32
    return %arg0, %c0_i32 : i32, i32
  }
  func.func @transform_1(%arg0: i32) -> (i32, i32) {
    %c0_i32 = arith.constant 0 : i32
    %c0_i32_0 = arith.constant 0 : i32
    %c0_i32_1 = arith.constant 0 : i32
    return %c0_i32, %c0_i32_0 : i32, i32
  }
  func.func @transform_2(%arg0: i32) -> (i32, i32) {
    %c0_i32 = arith.constant 0 : i32
    %c0_i32_0 = arith.constant 0 : i32
    return %arg0, %c0_i32 : i32, i32
  }
  func.func @transform_3(%arg0: i32) -> (i32, i32) {
    %c0_i32 = arith.constant 0 : i32
    %c0_i32_0 = arith.constant 0 : i32
    %c0_i32_1 = arith.constant 0 : i32
    return %c0_i32, %c0_i32_0 : i32, i32
  }
  func.func @transform_4(%arg0: i32) -> (i32, i32) {
    %c0_i32 = arith.constant 0 : i32
    %c0_i32_0 = arith.constant 0 : i32
    return %arg0, %c0_i32 : i32, i32
  }
}

</mosaic_0001>

<llo_original>
// kernel: tpu_custom_call.1
$region0: #{tpu_custom_call.1}
  #allocation0 [shape = 'u32[]', space=smem, size = 0x4, offset = 0x4, fixed_abs, tag = 'smem constant byte address 0x4 - core index']
  #allocation1 [shape = 'u32[144,128]{1,0:T(1,128)}', space=vmem, size = 0x12000, scoped, tag = 'internal scratch']
  %s0 = inlined_call_operand.vmem [shape: s32[16,1], index: 0, kind: input, shape index: {}]
  %s1 = inlined_call_operand.vmem [shape: s32[1,128], index: 1, kind: input, shape index: {}]
  %s2 = inlined_call_operand.vmem [shape: bf16[16,128], index: 2, kind: input, shape index: {}]
  %s3 = inlined_call_operand.hbm [shape: bf16[128,128], index: 3, kind: input, shape index: {}]
  %s4 = inlined_call_operand.vmem [shape: f32[16,1], index: 4, kind: output, shape index: {}]
  %s5 = sld [smem:[#allocation0]]
  $region30: #{tpu_custom_call.1} parent=0
    _
  %s7 = ssub.s32 1, %s5
  %s8 = scalar_select 0, %s7, %s5
  $region1: #{tpu_custom_call.1} parent=0
    #allocation2 [shape = 'u8[32768]{0}', space=vmem, size = 0x8000, scoped, tag = 'input window, operand 3, single buffered']
    #allocation3 [shape = 's32[1]{0}', space=sflag, size = 0x4, scoped, tag = 'scoped memory for tpu_custom_call.1']
    %9 = vsyncpa [#allocation3], 0
    // Predicated region
    $region2: #{tpu_custom_call.1} parent=1 // pred_check
      _
    $region3: #{tpu_custom_call.1} parent=1 // pred_check_branch
      %11 = sbr.rel (0) target = $region5
    $region4: #{tpu_custom_call.1} parent=1 // pred_region
      _
    $region5: #{tpu_custom_call.1} parent=1 // pred_fallthru
      _
    // Predicated region
    $region6: #{tpu_custom_call.1} parent=1 // pred_check
      _
    $region7: #{tpu_custom_call.1} parent=1 // pred_check_branch
      %13 = sbr.rel (0) target = $region9
    $region8: #{tpu_custom_call.1} parent=1 // pred_region
      _
    $region9: #{tpu_custom_call.1} parent=1 // pred_fallthru
      _
    // Predicated region
    $region10: #{tpu_custom_call.1} parent=1 // pred_check
      _
    $region11: #{tpu_custom_call.1} parent=1 // pred_check_branch
      %15 = sbr.rel (0) target = $region13
    $region12: #{tpu_custom_call.1} parent=1 // pred_region
      _
    $region13: #{tpu_custom_call.1} parent=1 // pred_fallthru
      _
    // Predicated region
    $region14: #{tpu_custom_call.1} parent=1 // pred_check
      _
    $region15: #{tpu_custom_call.1} parent=1 // pred_check_branch
      %17 = sbr.rel (0) target = $region17
    $region16: #{tpu_custom_call.1} parent=1 // pred_region
      %s19 = ssub.s32 1024, 1024
      %20 = vsyncadd [#allocation3], %s19
      %s21 = sshll.u32 [#allocation2], 4
      %s22 = int_to_ptr.vmem [resolvable:$true] %s21
      %27 = dma.hbm_to_vmem [thread:$0]  %s3, 1024, %s22, [#allocation3], 64, 64, 4
    $region17: #{tpu_custom_call.1} parent=1 // pred_fallthru
      _
    // Predicated region
    $region18: #{tpu_custom_call.1} parent=1 // pred_check
      _
    $region19: #{tpu_custom_call.1} parent=1 // pred_check_branch
      %29 = sbr.rel (0) target = $region21
    $region20: #{tpu_custom_call.1} parent=1 // pred_region
      %30 = dma.done [#allocation3], 1024
    $region21: #{tpu_custom_call.1} parent=1 // pred_fallthru
      _
    %v33 = vld [vmem:[%s2] sm:$0xf]
    %v34 = vld [vmem:[%s2 + $0x4] sm:$0xf]
    %v35 = vmul.bf16 %v33, 1092632864
    %v36 = vmul.bf16 %v34, 1092632864
    %v37 = vld [vmem:[#allocation2] sm:$0xf]
    %v38 = vld [vmem:[#allocation2 + $0x4] sm:$0xf]
    %v39 = vld [vmem:[#allocation2 + $0x8] sm:$0xf]
    %v40 = vld [vmem:[#allocation2 + $0xc] sm:$0xf]
    %v41 = vld [vmem:[#allocation2 + $0x10] sm:$0xf]
    %v42 = vld [vmem:[#allocation2 + $0x14] sm:$0xf]
    %v43 = vld [vmem:[#allocation2 + $0x18] sm:$0xf]
    %v44 = vld [vmem:[#allocation2 + $0x1c] sm:$0xf]
    %v45 = vld [vmem:[#allocation2 + $0x20] sm:$0xf]
    %v46 = vld [vmem:[#allocation2 + $0x24] sm:$0xf]
    %v47 = vld [vmem:[#allocation2 + $0x28] sm:$0xf]
    %v48 = vld [vmem:[#allocation2 + $0x2c] sm:$0xf]
    %v49 = vld [vmem:[#allocation2 + $0x30] sm:$0xf]
    %v50 = vld [vmem:[#allocation2 + $0x34] sm:$0xf]
    %v51 = vld [vmem:[#allocation2 + $0x38] sm:$0xf]
    %v52 = vld [vmem:[#allocation2 + $0x3c] sm:$0xf]
    %v55 = vunpack.c.l.b16 %v35
    %v56 = vunpack.c.l.b16 %v36
    %v57 = vpack.c.b16 %v56, %v55
    %v75 = vunpack.c.l.b16 %v37
    %v76 = vunpack.c.l.b16 %v38
    %v77 = vunpack.c.l.b16 %v39
    %v78 = vunpack.c.l.b16 %v40
    %v79 = vunpack.c.l.b16 %v41
    %v80 = vunpack.c.l.b16 %v42
    %v81 = vunpack.c.l.b16 %v43
    %v82 = vunpack.c.l.b16 %v44
    %v83 = vunpack.c.l.b16 %v45
    %v84 = vunpack.c.l.b16 %v46
    %v85 = vunpack.c.l.b16 %v47
    %v86 = vunpack.c.l.b16 %v48
    %v87 = vunpack.c.l.b16 %v49
    %v88 = vunpack.c.l.b16 %v50
    %v89 = vunpack.c.l.b16 %v51
    %v90 = vunpack.c.l.b16 %v52
    %v91 = vpack.c.b16 %v76, %v75
    %v92 = vpack.c.b16 %v78, %v77
    %v93 = vpack.c.b16 %v80, %v79
    %v94 = vpack.c.b16 %v82, %v81
    %v95 = vpack.c.b16 %v84, %v83
    %v96 = vpack.c.b16 %v86, %v85
    %v97 = vpack.c.b16 %v88, %v87
    %v98 = vpack.c.b16 %v90, %v89
    %107 = vmatprep.subr.bf16.mxu0 0
    %108 = vmatpush1.bf16.xpose.msra.mxu0 %v98
    %109 = vmatprep.subr.bf16.mxu0 0
    %110 = vmatpush1.bf16.xpose.msra.mxu0 %v97
    %111 = vmatprep.subr.bf16.mxu0 0
    %112 = vmatpush1.bf16.xpose.msra.mxu0 %v96
    %113 = vmatprep.subr.bf16.mxu0 0
    %114 = vmatpush1.bf16.xpose.msra.mxu0 %v95
    %115 = vmatprep.subr.bf16.mxu0 0
    %116 = vmatpush1.bf16.xpose.msra.mxu0 %v94
    %117 = vmatprep.subr.bf16.mxu0 0
    %118 = vmatpush1.bf16.xpose.msra.mxu0 %v93
    %119 = vmatprep.subr.bf16.mxu0 0
    %120 = vmatpush1.bf16.xpose.msra.mxu0 %v92
    %121 = vmatprep.subr.bf16.mxu0 0
    %122 = vmatpush1.bf16.xpose.msra.mxu0 %v91
    %123 = vmatprep.subr.bf16.mxu0 0
    %124 = vmatpush2.bf16.xpose.msra.mxu0 0
    %125 = vmatprep.subr.bf16.mxu0 0
    %126 = vmatpush2.bf16.xpose.msra.mxu0 0
    %127 = vmatprep.subr.bf16.mxu0 0
    %128 = vmatpush2.bf16.xpose.msra.mxu0 0
    %129 = vmatprep.subr.bf16.mxu0 0
    %130 = vmatpush2.bf16.xpose.msra.mxu0 0
    %131 = vmatprep.subr.bf16.mxu0 0
    %132 = vmatpush2.bf16.xpose.msra.mxu0 0
    %133 = vmatprep.subr.bf16.mxu0 0
    %134 = vmatpush2.bf16.xpose.msra.mxu0 0
    %135 = vmatprep.subr.bf16.mxu0 0
    %136 = vmatpush2.bf16.xpose.msra.mxu0 0
    %137 = vmatprep.subr.bf16.mxu0 0
    %138 = vmatpush2.bf16.xpose.msra.mxu0 0
    %139 = vmatprep.mubr.bf16.mxu0 0
    %140 = vmatmul.mubr.bf16.gmra.mxu0 %v57
    %v141 = vpop.f32.mrf.mxu0
    %v142 = vadd.f32 0.0, %v141
    %v143 = vpop.f32.mrf.mxu0
    %v144 = vpop.f32.mrf.mxu0
    %v145 = vadd.f32 0.0, %v144
    %v146 = vpop.f32.mrf.mxu0
    %147 = vdwg.mxu0
    %v148 = vld [vmem:[%s0] sm:$0xff]
    %v149 = vld [vmem:[%s0 + $0x8] sm:$0xff]
    %v150 = vld [vmem:[%s1] sm:$0x1]
    %v151 = vlaneseq
    %v152 = vand.u32 %v151, 127
    %v153 = vlaneseq
    %v154 = vshrl.u32 %v153, 7
    %v155 = vadd.s32 %v154, 8
    %s156 = smul.u32 0, 16
    %v157 = vstv %s156
    %v158 = vadd.s32 %v154, %v157
    %v159 = vadd.s32 %v155, %v157
    %vm160 = vcmp.ne.s32.totalorder %v152, %v158
    %vm161 = vcmp.ne.s32.totalorder %v152, %v159
    %vm162 = vcmp.ge.s32.totalorder %v150, 0
    %v163 = vsel %vm162, 1, 0
    %v164 = vlaneseq
    %v165 = vshrl.u32 %v164, 7
    %v166 = vsub.s32 0, %v165
    %v167 = vrot.slane %v163, %v166
    %vm168 = vcmp.eq.s32.totalorder %v167, 1
    %vm169 = vmand %vm160, %vm168
    %vm170 = vmand %vm161, %vm168
    %171 = vset.pattern.permute.xlu0 0
    %172 = vperm.xlu0 %171, %v148
    %v173 = vpop.permute.xlu0 %172
    %174 = vset.pattern.permute.xlu0 0
    %175 = vperm.xlu0 %174, %v149
    %v176 = vpop.permute.xlu0 %175
    %v177 = vlaneseq
    %v178 = vshrl.u32 %v177, 7
    %v179 = vsub.s32 0, %v178
    %v180 = vrot.slane %v150, %v179
    %vm181 = vcmp.eq.s32.totalorder %v173, %v180
    %vm182 = vcmp.eq.s32.totalorder %v176, %v180
    %vm183 = vmand %vm181, %vm169
    %vm184 = vmand %vm182, %vm170
    %v185 = vsel %vm169, %v142, -inf
    %v186 = vsel %vm170, %v145, -inf
    %187 = vmax.xlane.f32.xlu0 %v185
    %v188 = vpop.xlane.xlu0 %187
    %189 = vmax.xlane.f32.xlu0 %v186
    %v190 = vpop.xlane.xlu0 %189
    %v191 = vsub.f32 %v142, %v188
    %v192 = vsub.f32 %v145, %v190
    %v193 = vmul.f32 %v191, 1.442695
    %v194 = vpow.pop %v193
    %v195 = vmul.f32 %v192, 1.442695
    %v196 = vpow.pop %v195
    %v197 = vsel %vm169, %v194, 0.0
    %v198 = vsel %vm170, %v196, 0.0
    %199 = vadd.xlane.f32.xlu0 %v197
    %v200 = vpop.xlane.xlu0 %199
    %201 = vadd.xlane.f32.xlu0 %v198
    %v202 = vpop.xlane.xlu0 %201
    %v203 = vlog2.pop %v200
    %v204 = vmul.f32 %v203, 0.6931472
    %v205 = vlog2.pop %v202
    %v206 = vmul.f32 %v205, 0.6931472
    %v207 = vsub.f32 %v191, %v204
    %v208 = vsub.f32 %v192, %v206
    %v209 = vsel %vm183, 1, 0
    %v210 = vsel %vm184, 1, 0
    %v211 = vcvt.s32.f32 %v209
    %v212 = vcvt.s32.f32 %v210
    %v213 = vmul.f32 %v211, %v207
    %v214 = vmul.f32 %v212, %v208
    %215 = vadd.xlane.f32.xlu0 %v213
    %v216 = vpop.xlane.xlu0 %215
    %217 = vadd.xlane.f32.xlu0 %v214
    %v218 = vpop.xlane.xlu0 %217
    %219 = vadd.xlane.f32.xlu0 %v211
    %v220 = vpop.xlane.xlu0 %219
    %221 = vadd.xlane.f32.xlu0 %v212
    %v222 = vpop.xlane.xlu0 %221
    %vm223 = vcmp.gt.f32.partialorder %v220, 0.0
    %vm224 = vcmp.gt.f32.partialorder %v222, 0.0
    %v225 = vsel %vm223, %v220, 1.0
    %v226 = vsel %vm224, %v222, 1.0
    %v227 = vrcp.pop %v225
    %v228 = vrcp.pop %v226
    %v229 = vmul.f32 %v216, %v227
    %v230 = vmul.f32 %v218, %v228
    %v231 = vsel %vm223, %v229, 0.0
    %v232 = vsel %vm224, %v230, 0.0
    %v233 = vmul.f32 %v231, -0.1
    %v234 = vmul.f32 %v232, -0.1
    %vm235 = vcmask 7168
    %236 = vst.msk [vmem:[%s4] sm:$0xff] %vm235, %v233
    %237 = vst.msk [vmem:[%s4 + $0x8] sm:$0xff] %vm235, %v234
    // Predicated region
    $region22: #{tpu_custom_call.1} parent=1 // pred_check
      _
    $region23: #{tpu_custom_call.1} parent=1 // pred_check_branch
      %239 = sbr.rel (0) target = $region25
    $region24: #{tpu_custom_call.1} parent=1 // pred_region
      _
    $region25: #{tpu_custom_call.1} parent=1 // pred_fallthru
      _
    // Predicated region
    $region26: #{tpu_custom_call.1} parent=1 // pred_check
      _
    $region27: #{tpu_custom_call.1} parent=1 // pred_check_branch
      %241 = sbr.rel (0) target = $region29
    $region28: #{tpu_custom_call.1} parent=1 // pred_region
      _
    $region29: #{tpu_custom_call.1} parent=1 // pred_fallthru
      _
    %242 = vsyncpa [#allocation3], 1

</llo_original>
